<compile_context>
chip_gen: v7x
topology: tpu7x:2x2x1
jax: 0.10.0
libtpu: 0.0.40
codegen_flags: <defaults>
</compile_context>

<pallas_src>
import functools

import jax
import jax.numpy as jnp
from jax.experimental import pallas as pl
from jax.experimental.pallas import tpu as pltpu


def _round_up(x: int, m: int) -> int:
    return (x + m - 1) // m * m


def _patch_matmul_kernel(a_ref, w_ref, o_ref):
    """One (tm, tn) output tile: out = A_tile @ W_tile, full K in one shot."""
    o_ref[...] = jnp.dot(
        a_ref[...], w_ref[...], preferred_element_type=jnp.float32
    ).astype(o_ref.dtype)


def _patch_matmul(a, w, out_dtype, *, tm, tn):
    """a: (M_pad, K_pad) bf16, w: (K_pad, E_pad) bf16 -> (M_pad, E_pad) out_dtype."""
    M_pad, K_pad = a.shape
    K2, E_pad = w.shape
    assert K_pad == K2 and M_pad % tm == 0 and E_pad % tn == 0

    grid = (M_pad // tm, E_pad // tn)
    out_isize = jnp.dtype(out_dtype).itemsize

    # True HBM traffic: A read once (its block index is constant over j);
    # W read once when fully resident (tn == E_pad), else once per M tile.
    w_reads = 1 if tn == E_pad else (M_pad // tm)
    cost = pl.CostEstimate(
        flops=2 * M_pad * E_pad * K_pad,
        transcendentals=0,
        bytes_accessed=(
            M_pad * K_pad * a.dtype.itemsize
            + w_reads * E_pad * K_pad * w.dtype.itemsize
            + M_pad * E_pad * out_isize
        ),
    )

    # Double-buffered block footprint + margin -> explicit scoped-VMEM budget.
    block_bytes = (
        tm * K_pad * a.dtype.itemsize
        + K_pad * tn * w.dtype.itemsize
        + tm * tn * out_isize
    )
    vmem_limit = min(max(2 * block_bytes + (2 << 20), 16 << 20), 48 << 20)

    return pl.pallas_call(
        _patch_matmul_kernel,
        out_shape=jax.ShapeDtypeStruct((M_pad, E_pad), out_dtype),
        grid_spec=pltpu.PrefetchScalarGridSpec(
            num_scalar_prefetch=0,
            grid=grid,
            in_specs=[
                pl.BlockSpec((tm, K_pad), lambda i, j: (i, 0)),
                pl.BlockSpec((K_pad, tn), lambda i, j: (0, j)),
            ],
            out_specs=pl.BlockSpec((tm, tn), lambda i, j: (i, j)),
        ),
        compiler_params=pltpu.CompilerParams(
            dimension_semantics=("parallel", "parallel"),
            vmem_limit_bytes=vmem_limit,
        ),
        cost_estimate=cost,
    )(a, w)


@functools.partial(jax.jit, static_argnums=(2,))
def patch_embed_forward(x, weight, patch_size):
    """PatchEmbed.forward (pool=False).

    x:      (B, C, H, W)   (NCHW, same as PyTorch)
    weight: (E, C, P, P)   (PyTorch Conv2d weight layout)
    returns (B, N, E) with N = (H//P) * (W//P), dtype == x.dtype
    """
    # TODO(synk): pool=True branch (1x1 conv + MaxPool2d) is not exercised here.
    B, C, H, W = x.shape
    E = weight.shape[0]
    P = patch_size
    assert H % P == 0 and W % P == 0
    nh, nw = H // P, W // P
    N = nh * nw
    M = B * N
    K = C * P * P

    # im2col in bf16 (halves the bytes moved by the layout pass and kernel DMA).
    # (B,C,H,W) -> (B,C,nh,P,nw,P) -> (B,nh,nw,C,P,P) -> (M, K)
    # TODO(synk): this 6-D transpose is a separate XLA pass; folding it into the
    # kernel's input DMA (allow_input_fusion / gather BlockSpec) is future work.
    xb = x.astype(jnp.bfloat16)
    a = xb.reshape(B, C, nh, P, nw, P).transpose(0, 2, 4, 1, 3, 5).reshape(M, K)

    # Conv weight flattened to (E, K) -- flatten order (c,p,q) matches the patch
    # layout above -- then transposed ONCE to (K, E) so the kernel runs a plain
    # NN matmul on the MXU (no per-tile XLU transpose of the RHS).
    w = weight.astype(jnp.bfloat16).reshape(E, K).T  # (K, E)

    K_pad = _round_up(K, 128)
    E_pad = _round_up(E, 128)

    # M tile: big for throughput, but keep >=2 tiles when M allows so both
    # v7x TensorCores get work.
    M8 = _round_up(M, 8)
    if M8 >= 1024:
        tm = 512
    elif M8 >= 32:
        tm = _round_up((M8 + 1) // 2, 16)
    else:
        tm = M8
    M_pad = _round_up(M, tm)

    # E tile: keep the whole flattened weight resident in VMEM when it fits
    # (the common PatchEmbed case); otherwise stream (K_pad, tn) weight tiles.
    if K_pad * E_pad * 2 <= 8 * 1024 * 1024:
        tn = E_pad
    else:
        tn = 512 if E_pad % 512 == 0 else (256 if E_pad % 256 == 0 else 128)

    a = jnp.pad(a, ((0, M_pad - M), (0, K_pad - K)))
    w = jnp.pad(w, ((0, K_pad - K), (0, E_pad - E)))

    out = _patch_matmul(a, w, x.dtype, tm=tm, tn=tn)  # (M_pad, E_pad) x.dtype
    if M_pad != M or E_pad != E:
        out = out[:M, :E]
    return out.reshape(B, N, E)


if __name__ == "__main__":
    # Small, conv-consistent shapes: B=2, C=4, H=W=16, patch_size=8, embed_dim=32
    B, C, H, W = 2, 4, 16, 16
    patch_size = 8
    embed_dim = 32

    key = jax.random.PRNGKey(0)
    kx, kw = jax.random.split(key)
    x = jax.random.normal(kx, (B, C, H, W), dtype=jnp.float32)
    # Deterministic synthetic Conv2d weight, PyTorch layout (E, C, P, P).
    weight = jax.random.normal(
        kw, (embed_dim, C, patch_size, patch_size), dtype=jnp.float32
    ) * 0.02

    out = patch_embed_forward(x, weight, patch_size)
    out = jax.block_until_ready(out)

    # Cross-check against XLA's f32 conv (same math as the PyTorch module).
    ref = jax.lax.conv_general_dilated(
        x, weight,
        window_strides=(patch_size, patch_size),
        padding="VALID",
        dimension_numbers=("NCHW", "OIHW", "NCHW"),
    )  # (B, E, H//P, W//P)
    ref = ref.reshape(B, embed_dim, -1).transpose(0, 2, 1)  # flatten(2).transpose(1,2)

    N = (H // patch_size) * (W // patch_size)
    assert out.shape == (B, N, embed_dim)
    # bf16 MXU operands with f32 accumulation -> loose tolerance vs f32 conv ref.
    err = float(jnp.max(jnp.abs(out - ref)))
    assert jnp.allclose(out, ref, atol=2e-2, rtol=2e-2), err

    print("KERNEL_OK")
</pallas_src>

<mosaic_0001>
module attributes {stable_mosaic.version = 11 : i64} {
  func.func @_patch_matmul_kernel(%arg0: i32, %arg1: i32, %arg2: memref<8x256xbf16, #tpu.memory_space<vmem>>, %arg3: memref<256x128xbf16, #tpu.memory_space<vmem>>, %arg4: memref<8x128xf32, #tpu.memory_space<vmem>>) attributes {dimension_semantics = [#tpu.dimension_semantics<parallel>, #tpu.dimension_semantics<parallel>], iteration_bounds = array<i64: 1, 1>, scalar_prefetch = 0 : i64, scratch_operands = 0 : i64, tpu.core_type = #tpu.core_type<tc>, window_params = [{transform_indices = @transform_0, window_bounds = array<i64: 8, 256>}, {transform_indices = @transform_1, window_bounds = array<i64: 256, 128>}, {transform_indices = @transform_2, window_bounds = array<i64: 8, 128>}]} {
    %c0 = arith.constant 0 : index
    %c0_0 = arith.constant 0 : index
    %0 = vector.load %arg2[%c0, %c0_0] : memref<8x256xbf16, #tpu.memory_space<vmem>>, vector<8x256xbf16>
    %c0_1 = arith.constant 0 : index
    %c0_2 = arith.constant 0 : index
    %1 = vector.load %arg3[%c0_1, %c0_2] : memref<256x128xbf16, #tpu.memory_space<vmem>>, vector<256x128xbf16>
    %cst = arith.constant dense<0.000000e+00> : vector<8x128xf32>
    %2 = tpu.matmul %0, %1, %cst {dimension_numbers = #tpu.dot_dimension_numbers<[1], [0], [0], [1], [0, 0, 1, 1], [], []>} : vector<8x256xbf16>, vector<256x128xbf16>, vector<8x128xf32> -> vector<8x128xf32>
    %c0_3 = arith.constant 0 : index
    %c0_4 = arith.constant 0 : index
    %3 = vector.load %arg4[%c0_3, %c0_4] : memref<8x128xf32, #tpu.memory_space<vmem>>, vector<8x128xf32>
    tpu.vector_store %arg4[%c0_3, %c0_4], %2 {strides = array<i32>} : memref<8x128xf32, #tpu.memory_space<vmem>>, vector<8x128xf32>,
    return
  }
  func.func @transform_0(%arg0: i32, %arg1: i32) -> (i32, i32) {
    %c0_i32 = arith.constant 0 : i32
    %c0_i32_0 = arith.constant 0 : i32
    return %arg0, %c0_i32 : i32, i32
  }
  func.func @transform_1(%arg0: i32, %arg1: i32) -> (i32, i32) {
    %c0_i32 = arith.constant 0 : i32
    %c0_i32_0 = arith.constant 0 : i32
    return %c0_i32, %arg1 : i32, i32
  }
  func.func @transform_2(%arg0: i32, %arg1: i32) -> (i32, i32) {
    %c0_i32 = arith.constant 0 : i32
    return %arg0, %arg1 : i32, i32
  }
}

</mosaic_0001>

<llo_original>
// kernel: patch_embed_forward.1
$region0: #{patch_embed_forward.1}
  #allocation0 [shape = 'u32[]', space=smem, size = 0x4, offset = 0x4, fixed_abs, tag = 'smem constant byte address 0x4 - core index']
  #allocation1 [shape = 'u32[144,128]{1,0:T(1,128)}', space=vmem, size = 0x12000, scoped, tag = 'internal scratch']
  %s0 = inlined_call_operand.vmem [shape: bf16[8,256], index: 0, kind: input, shape index: {}]
  %s1 = inlined_call_operand.vmem [shape: bf16[256,128], index: 1, kind: input, shape index: {}]
  %s2 = inlined_call_operand.hbm [shape: f32[8,128], index: 2, kind: output, shape index: {}]
  %s3 = sld [smem:[#allocation0]]
  $region18: #{patch_embed_forward.1} parent=0
    _
  %s5 = ssub.s32 1, %s3
  %s6 = scalar_select 0, %s5, %s3
  $region1: #{patch_embed_forward.1} parent=0
    #allocation2 [shape = 'u8[4096]{0}', space=vmem, size = 0x1000, scoped, tag = 'output window, operand 0, single buffered']
    #allocation3 [shape = 's32[1]{0}', space=sflag, size = 0x4, scoped, tag = 'scoped memory for patch_embed_forward.1']
    %7 = vsyncpa [#allocation3], 0
    // Predicated region
    $region2: #{patch_embed_forward.1} parent=1 // pred_check
      _
    $region3: #{patch_embed_forward.1} parent=1 // pred_check_branch
      %9 = sbr.rel (0) target = $region5
    $region4: #{patch_embed_forward.1} parent=1 // pred_region
      _
    $region5: #{patch_embed_forward.1} parent=1 // pred_fallthru
      _
    // Predicated region
    $region6: #{patch_embed_forward.1} parent=1 // pred_check
      _
    $region7: #{patch_embed_forward.1} parent=1 // pred_check_branch
      %11 = sbr.rel (0) target = $region9
    $region8: #{patch_embed_forward.1} parent=1 // pred_region
      _
    $region9: #{patch_embed_forward.1} parent=1 // pred_fallthru
      _
    %v13 = vld [vmem:[%s0] sm:$0xff]
    %v14 = vld [vmem:[%s1] sm:$0xf]
    %v15 = vld [vmem:[%s1 + $0x4] sm:$0xf]
    %v16 = vld [vmem:[%s1 + $0x8] sm:$0xf]
    %v17 = vld [vmem:[%s1 + $0xc] sm:$0xf]
    %v18 = vld [vmem:[%s1 + $0x10] sm:$0xf]
    %v19 = vld [vmem:[%s1 + $0x14] sm:$0xf]
    %v20 = vld [vmem:[%s1 + $0x18] sm:$0xf]
    %v21 = vld [vmem:[%s1 + $0x1c] sm:$0xf]
    %v22 = vld [vmem:[%s1 + $0x20] sm:$0xf]
    %v23 = vld [vmem:[%s1 + $0x24] sm:$0xf]
    %v24 = vld [vmem:[%s1 + $0x28] sm:$0xf]
    %v25 = vld [vmem:[%s1 + $0x2c] sm:$0xf]
    %v26 = vld [vmem:[%s1 + $0x30] sm:$0xf]
    %v27 = vld [vmem:[%s1 + $0x34] sm:$0xf]
    %v28 = vld [vmem:[%s1 + $0x38] sm:$0xf]
    %v29 = vld [vmem:[%s1 + $0x3c] sm:$0xf]
    %v30 = vld [vmem:[%s1 + $0x40] sm:$0xf]
    %v31 = vld [vmem:[%s1 + $0x44] sm:$0xf]
    %v32 = vld [vmem:[%s1 + $0x48] sm:$0xf]
    %v33 = vld [vmem:[%s1 + $0x4c] sm:$0xf]
    %v34 = vld [vmem:[%s1 + $0x50] sm:$0xf]
    %v35 = vld [vmem:[%s1 + $0x54] sm:$0xf]
    %v36 = vld [vmem:[%s1 + $0x58] sm:$0xf]
    %v37 = vld [vmem:[%s1 + $0x5c] sm:$0xf]
    %v38 = vld [vmem:[%s1 + $0x60] sm:$0xf]
    %v39 = vld [vmem:[%s1 + $0x64] sm:$0xf]
    %v40 = vld [vmem:[%s1 + $0x68] sm:$0xf]
    %v41 = vld [vmem:[%s1 + $0x6c] sm:$0xf]
    %v42 = vld [vmem:[%s1 + $0x70] sm:$0xf]
    %v43 = vld [vmem:[%s1 + $0x74] sm:$0xf]
    %v44 = vld [vmem:[%s1 + $0x78] sm:$0xf]
    %v45 = vld [vmem:[%s1 + $0x7c] sm:$0xf]
    %v47 = vunpack.c.l.b16 %v13
    %v48 = vunpack.c.h.b16 %v13
    %v49 = vpack.c.b16 %v47, %v47
    %v50 = vpack.c.b16 %v48, %v48
    %v85 = vunpack.c.l.b16 %v14
    %v86 = vunpack.c.l.b16 %v15
    %v87 = vunpack.c.l.b16 %v16
    %v88 = vunpack.c.l.b16 %v17
    %v89 = vunpack.c.l.b16 %v18
    %v90 = vunpack.c.l.b16 %v19
    %v91 = vunpack.c.l.b16 %v20
    %v92 = vunpack.c.l.b16 %v21
    %v93 = vunpack.c.l.b16 %v22
    %v94 = vunpack.c.l.b16 %v23
    %v95 = vunpack.c.l.b16 %v24
    %v96 = vunpack.c.l.b16 %v25
    %v97 = vunpack.c.l.b16 %v26
    %v98 = vunpack.c.l.b16 %v27
    %v99 = vunpack.c.l.b16 %v28
    %v100 = vunpack.c.l.b16 %v29
    %v101 = vunpack.c.l.b16 %v30
    %v102 = vunpack.c.l.b16 %v31
    %v103 = vunpack.c.l.b16 %v32
    %v104 = vunpack.c.l.b16 %v33
    %v105 = vunpack.c.l.b16 %v34
    %v106 = vunpack.c.l.b16 %v35
    %v107 = vunpack.c.l.b16 %v36
    %v108 = vunpack.c.l.b16 %v37
    %v109 = vunpack.c.l.b16 %v38
    %v110 = vunpack.c.l.b16 %v39
    %v111 = vunpack.c.l.b16 %v40
    %v112 = vunpack.c.l.b16 %v41
    %v113 = vunpack.c.l.b16 %v42
    %v114 = vunpack.c.l.b16 %v43
    %v115 = vunpack.c.l.b16 %v44
    %v116 = vunpack.c.l.b16 %v45
    %v117 = vpack.c.b16 %v86, %v85
    %v118 = vpack.c.b16 %v88, %v87
    %v119 = vpack.c.b16 %v90, %v89
    %v120 = vpack.c.b16 %v92, %v91
    %v121 = vpack.c.b16 %v94, %v93
    %v122 = vpack.c.b16 %v96, %v95
    %v123 = vpack.c.b16 %v98, %v97
    %v124 = vpack.c.b16 %v100, %v99
    %v125 = vpack.c.b16 %v102, %v101
    %v126 = vpack.c.b16 %v104, %v103
    %v127 = vpack.c.b16 %v106, %v105
    %v128 = vpack.c.b16 %v108, %v107
    %v129 = vpack.c.b16 %v110, %v109
    %v130 = vpack.c.b16 %v112, %v111
    %v131 = vpack.c.b16 %v114, %v113
    %v132 = vpack.c.b16 %v116, %v115
    %149 = vmatprep.subr.bf16.mxu0 0
    %150 = vmatpush1.bf16.msra.mxu0 %v117
    %151 = vmatprep.subr.bf16.mxu0 0
    %152 = vmatpush1.bf16.msra.mxu0 %v118
    %153 = vmatprep.subr.bf16.mxu0 0
    %154 = vmatpush1.bf16.msra.mxu0 %v119
    %155 = vmatprep.subr.bf16.mxu0 0
    %156 = vmatpush1.bf16.msra.mxu0 %v120
    %157 = vmatprep.subr.bf16.mxu0 0
    %158 = vmatpush1.bf16.msra.mxu0 %v121
    %159 = vmatprep.subr.bf16.mxu0 0
    %160 = vmatpush1.bf16.msra.mxu0 %v122
    %161 = vmatprep.subr.bf16.mxu0 0
    %162 = vmatpush1.bf16.msra.mxu0 %v123
    %163 = vmatprep.subr.bf16.mxu0 0
    %164 = vmatpush1.bf16.msra.mxu0 %v124
    %165 = vmatprep.subr.bf16.mxu0 0
    %166 = vmatpush1.bf16.msra.mxu0 %v125
    %167 = vmatprep.subr.bf16.mxu0 0
    %168 = vmatpush1.bf16.msra.mxu0 %v126
    %169 = vmatprep.subr.bf16.mxu0 0
    %170 = vmatpush1.bf16.msra.mxu0 %v127
    %171 = vmatprep.subr.bf16.mxu0 0
    %172 = vmatpush1.bf16.msra.mxu0 %v128
    %173 = vmatprep.subr.bf16.mxu0 0
    %174 = vmatpush1.bf16.msra.mxu0 %v129
    %175 = vmatprep.subr.bf16.mxu0 0
    %176 = vmatpush1.bf16.msra.mxu0 %v130
    %177 = vmatprep.subr.bf16.mxu0 0
    %178 = vmatpush1.bf16.msra.mxu0 %v131
    %179 = vmatprep.subr.bf16.mxu0 0
    %180 = vmatpush1.bf16.msra.mxu0 %v132
    %181 = vmatprep.mubr.bf16.mxu0 %v50
    %182 = vmatmul.mubr.bf16.gmra.mrb[0].mxu0 %v49
    %v183 = vpop.f32.mrb[0].mxu0
    %v184 = vadd.f32 0.0, %v183
    %v185 = vpop.f32.mrb[0].mxu0
    %v186 = vpop.f32.mrb[0].mxu0
    %v187 = vpop.f32.mrb[0].mxu0
    %188 = vdwg.mxu0
    %189 = vst [vmem:[#allocation2] sm:$0xff] %v184
    // Predicated region
    $region10: #{patch_embed_forward.1} parent=1 // pred_check
      _
    $region11: #{patch_embed_forward.1} parent=1 // pred_check_branch
      %191 = sbr.rel (0) target = $region13
    $region12: #{patch_embed_forward.1} parent=1 // pred_region
      %s193 = ssub.s32 128, 128
      %194 = vsyncadd [#allocation3], %s193
      %s196 = sshll.u32 [#allocation2], 4
      %s197 = int_to_ptr.vmem [resolvable:$true] %s196
      %199 = dma.vmem_to_hbm [thread:$0]  %s197, 128, %s2, [#allocation3]
    $region13: #{patch_embed_forward.1} parent=1 // pred_fallthru
      _
    // Predicated region
    $region14: #{patch_embed_forward.1} parent=1 // pred_check
      _
    $region15: #{patch_embed_forward.1} parent=1 // pred_check_branch
      %201 = sbr.rel (0) target = $region17
    $region16: #{patch_embed_forward.1} parent=1 // pred_region
      %202 = dma.done [#allocation3], 128
    $region17: #{patch_embed_forward.1} parent=1 // pred_fallthru
      _
    %203 = vsyncpa [#allocation3], 1

</llo_original>
